<compile_context>
chip_gen: v7x
topology: tpu7x:2x2x1
jax: 0.10.0
libtpu: 0.0.40
codegen_flags: <defaults>
</compile_context>

<pallas_src>
import functools
import math

import numpy as np
import jax
import jax.numpy as jnp
from jax import lax
from jax.experimental import pallas as pl
from jax.experimental.pallas import tpu as pltpu


def _round_up(v, m):
    return (v + m - 1) // m * m


def _topk_subs_kernel(m_ref, x_ref, w_ref, b_ref, reps_ref, scores_ref, acc_ref):
    # m_ref: (n_subs_pad, tk) membership counts tile, x_ref: (tk, D_pad),
    # w_ref: (1, D_pad) = nn.Linear(in_dim, 1).weight (zero-padded),
    # b_ref: (1,) bias in SMEM.
    k = pl.program_id(0)

    @pl.when(k == 0)
    def _():
        acc_ref[...] = jnp.zeros_like(acc_ref)

    acc_ref[...] += jnp.dot(m_ref[...], x_ref[...],
                            preferred_element_type=jnp.float32)

    @pl.when(k == pl.num_programs(0) - 1)
    def _():
        reps = acc_ref[...]
        reps_ref[...] = reps
        # proj(Z).squeeze() + sigmoid (Z == reps, dropout is identity in eval).
        logits = jnp.sum(reps * w_ref[...], axis=-1, keepdims=True) + b_ref[0]
        # Lane-dense store (broadcast across 128 lanes) -> unmasked vst.
        scores_ref[...] = jnp.broadcast_to(jax.nn.sigmoid(logits),
                                           scores_ref.shape)


def _pallas_forward(M_pad, x_pad, w_pad, b):
    n_subs_pad, N_pad = M_pad.shape
    _, D_pad = x_pad.shape
    # Tile the reduction (node) axis; tk is a 128-multiple divisor of N_pad.
    tk = math.gcd(N_pad, 512)
    grid = (N_pad // tk,)

    reps, scores = pl.pallas_call(
        _topk_subs_kernel,
        out_shape=(
            jax.ShapeDtypeStruct((n_subs_pad, D_pad), jnp.float32),  # reps
            jax.ShapeDtypeStruct((n_subs_pad, 128), jnp.float32),    # scores
        ),
        grid=grid,
        in_specs=[
            pl.BlockSpec((n_subs_pad, tk), lambda k: (0, k),
                         memory_space=pltpu.MemorySpace.VMEM),
            pl.BlockSpec((tk, D_pad), lambda k: (k, 0),
                         memory_space=pltpu.MemorySpace.VMEM),
            pl.BlockSpec((1, D_pad), lambda k: (0, 0),
                         memory_space=pltpu.MemorySpace.VMEM),
            pl.BlockSpec(memory_space=pltpu.MemorySpace.SMEM),   # bias scalar
        ],
        out_specs=(
            pl.BlockSpec((n_subs_pad, D_pad), lambda k: (0, 0),
                         memory_space=pltpu.MemorySpace.VMEM),
            pl.BlockSpec((n_subs_pad, 128), lambda k: (0, 0),
                         memory_space=pltpu.MemorySpace.VMEM),
        ),
        scratch_shapes=[pltpu.VMEM((n_subs_pad, D_pad), jnp.float32)],
        compiler_params=pltpu.CompilerParams(
            dimension_semantics=("arbitrary",)),
    )(M_pad, x_pad, w_pad, b)
    return reps, scores


@functools.partial(jax.jit, static_argnames=("n_subs", "kk"))
def _forward(M_pad, x, w, b, *, n_subs, kk):
    """Fused: pad inputs -> pallas kernel -> top_k -> gather selected reps."""
    n_subs_pad, N_pad = M_pad.shape
    n_nodes, in_dim = x.shape
    D_pad = _round_up(in_dim, 128)

    x_pad = jnp.zeros((N_pad, D_pad), jnp.float32)
    x_pad = x_pad.at[:n_nodes, :in_dim].set(x.astype(jnp.float32))
    w_pad = jnp.zeros((1, D_pad), jnp.float32).at[:, :in_dim].set(w)

    reps_pad, scores_pad = _pallas_forward(M_pad, x_pad, w_pad, b)
    reps = reps_pad[:n_subs, :in_dim]
    scores = scores_pad[:n_subs, 0]

    idx = lax.top_k(scores, kk)[1]
    selected_reps = reps[idx]
    return idx, selected_reps, reps


class TopKSubs:
    """JAX/Pallas port of Top_k_Subs(k, in_dim, p)."""

    def __init__(self, k, in_dim, p, key):
        self.k = k
        self.in_dim = in_dim
        self.p = p
        wkey, bkey = jax.random.split(key)
        bound = 1.0 / (in_dim ** 0.5)  # nn.Linear default uniform init range
        self.w = jax.random.uniform(wkey, (1, in_dim), jnp.float32, -bound, bound)
        self.b = jax.random.uniform(bkey, (1,), jnp.float32, -bound, bound)
        # TODO(synk): nn.Dropout is applied as identity (eval mode); the
        # training-mode stochastic mask is not reproduced.

    @staticmethod
    def _build_membership(subs, n_nodes):
        """Host-side (numpy) vectorized build of the padded count matrix."""
        n_subs = len(subs)
        n_subs_pad = _round_up(max(n_subs, 1), 8)
        n_pad = _round_up(max(n_nodes, 1), 128)
        M = np.zeros((n_subs_pad, n_pad), np.float32)
        if n_subs:
            rows = np.concatenate(
                [np.full(len(s), i, np.int32) for i, s in enumerate(subs)])
            cols = np.concatenate(
                [np.asarray(s, dtype=np.int32) for s in subs])
            # duplicates inside a sub are summed, matching torch.sum(x[sub,:],0)
            np.add.at(M, (rows, cols), 1.0)
        return jnp.asarray(M)

    def __call__(self, x, subs):
        n_subs = len(subs)
        n_nodes, in_dim = x.shape
        assert in_dim == self.in_dim

        if n_subs == 0:
            return subs, jnp.zeros((0, self.in_dim), jnp.float32)

        M_pad = self._build_membership(subs, n_nodes)
        # Note: torch.randn(len(subs), in_dim) in the reference is fully
        # overwritten before use, so it is not reproduced.

        if n_subs >= 2:
            # clamp so top_k never asks for more entries than exist
            kk = min(n_subs, max(2, int(self.k * n_subs)))
            idx, selected_reps, _ = _forward(M_pad, x, self.w, self.b,
                                             n_subs=n_subs, kk=kk)
            # Single unavoidable host sync: the module contract returns a
            # Python list of subsets, so the top-k indices must come to host.
            # selected_reps itself stays on device.
            idx_host = np.asarray(idx)
            selected_subs = [subs[int(j)] for j in idx_host]
            return selected_subs, selected_reps
        else:
            _, _, reps = _forward(M_pad, x, self.w, self.b,
                                  n_subs=n_subs, kk=1)
            return subs, reps


if __name__ == "__main__":
    key = jax.random.PRNGKey(0)
    xkey, pkey = jax.random.split(key)

    N, in_dim = 16, 32
    x = jax.random.normal(xkey, (N, in_dim), dtype=jnp.float32)
    subs = [
        [0, 1, 2],
        [3, 4],
        [5, 6, 7, 8],
        [9],
        [10, 11, 12, 13],
        [14, 15],
    ]

    module = TopKSubs(k=0.5, in_dim=in_dim, p=0.5, key=pkey)
    selected_subs, selected_reps = module(x, subs)

    jax.block_until_ready(selected_reps)
    expected_rows = min(len(subs), max(2, int(0.5 * len(subs))))
    assert selected_reps.shape == (expected_rows, in_dim)
    assert len(selected_subs) == selected_reps.shape[0]

    # quick numeric sanity check against a plain-JAX reference
    reps_ref = jnp.stack(
        [jnp.sum(x[jnp.asarray(s, jnp.int32), :], axis=0) for s in subs])
    scores_ref = jax.nn.sigmoid(reps_ref @ module.w[0] + module.b[0])
    idx_ref = jax.lax.top_k(scores_ref, expected_rows)[1]
    np.testing.assert_allclose(np.asarray(selected_reps),
                               np.asarray(reps_ref[idx_ref]),
                               rtol=1e-5, atol=1e-5)

    print("KERNEL_OK")
</pallas_src>

<mosaic_0001>
module attributes {stable_mosaic.version = 11 : i64} {
  func.func @_topk_subs_kernel(%arg0: i32, %arg1: memref<8x128xf32, #tpu.memory_space<vmem>>, %arg2: memref<128x128xf32, #tpu.memory_space<vmem>>, %arg3: memref<1x128xf32, #tpu.memory_space<vmem>>, %arg4: memref<1xf32, #tpu.memory_space<smem>>, %arg5: memref<8x128xf32, #tpu.memory_space<vmem>>, %arg6: memref<8x128xf32, #tpu.memory_space<vmem>>, %arg7: memref<8x128xf32, #tpu.memory_space<vmem>>) attributes {dimension_semantics = [#tpu.dimension_semantics<arbitrary>], iteration_bounds = array<i64: 1>, scalar_prefetch = 0 : i64, scratch_operands = 1 : i64, tpu.core_type = #tpu.core_type<tc>, window_params = [{transform_indices = @transform_0, window_bounds = array<i64: 8, 128>}, {transform_indices = @transform_1, window_bounds = array<i64: 128, 128>}, {pipeline_mode = #tpu.pipeline_mode<synchronous>, transform_indices = @transform_2, window_bounds = array<i64: 1, 128>}, {transform_indices = @transform_3, window_bounds = array<i64: 1>}, {pipeline_mode = #tpu.pipeline_mode<synchronous>, transform_indices = @transform_4, window_bounds = array<i64: 8, 128>}, {pipeline_mode = #tpu.pipeline_mode<synchronous>, transform_indices = @transform_5, window_bounds = array<i64: 8, 128>}]} {
    %c0_i32 = arith.constant 0 : i32
    %0 = arith.cmpi eq, %arg0, %c0_i32 : i32
    %1 = arith.extui %0 : i1 to i32
    %c0_i32_0 = arith.constant 0 : i32
    %2 = arith.cmpi ne, %1, %c0_i32_0 : i32
    scf.if %2 {
      %cst_10 = arith.constant 0.000000e+00 : f32
      %12 = vector.broadcast %cst_10 : f32 to vector<8x128xf32>
      %c0_11 = arith.constant 0 : index
      %c0_12 = arith.constant 0 : index
      %13 = vector.load %arg7[%c0_11, %c0_12] : memref<8x128xf32, #tpu.memory_space<vmem>>, vector<8x128xf32>
      tpu.vector_store %arg7[%c0_11, %c0_12], %12 {strides = array<i32>} : memref<8x128xf32, #tpu.memory_space<vmem>>, vector<8x128xf32>,
    } else {
    }
    %c0 = arith.constant 0 : index
    %c0_1 = arith.constant 0 : index
    %3 = vector.load %arg7[%c0, %c0_1] : memref<8x128xf32, #tpu.memory_space<vmem>>, vector<8x128xf32>
    %c0_2 = arith.constant 0 : index
    %c0_3 = arith.constant 0 : index
    %4 = vector.load %arg1[%c0_2, %c0_3] : memref<8x128xf32, #tpu.memory_space<vmem>>, vector<8x128xf32>
    %c0_4 = arith.constant 0 : index
    %c0_5 = arith.constant 0 : index
    %5 = vector.load %arg2[%c0_4, %c0_5] : memref<128x128xf32, #tpu.memory_space<vmem>>, vector<128x128xf32>
    %cst = arith.constant dense<0.000000e+00> : vector<8x128xf32>
    %6 = tpu.matmul %4, %5, %cst {dimension_numbers = #tpu.dot_dimension_numbers<[1], [0], [0], [1], [0, 0, 1, 1], [], []>} : vector<8x128xf32>, vector<128x128xf32>, vector<8x128xf32> -> vector<8x128xf32>
    %7 = arith.addf %3, %6 : vector<8x128xf32>
    %c0_6 = arith.constant 0 : index
    %c0_7 = arith.constant 0 : index
    %8 = vector.load %arg7[%c0_6, %c0_7] : memref<8x128xf32, #tpu.memory_space<vmem>>, vector<8x128xf32>
    tpu.vector_store %arg7[%c0_6, %c0_7], %7 {strides = array<i32>} : memref<8x128xf32, #tpu.memory_space<vmem>>, vector<8x128xf32>,
    %c0_i32_8 = arith.constant 0 : i32
    %9 = arith.cmpi eq, %arg0, %c0_i32_8 : i32
    %10 = arith.extui %9 : i1 to i32
    %c0_i32_9 = arith.constant 0 : i32
    %11 = arith.cmpi ne, %10, %c0_i32_9 : i32
    scf.if %11 {
      %c0_10 = arith.constant 0 : index
      %c0_11 = arith.constant 0 : index
      %12 = vector.load %arg7[%c0_10, %c0_11] : memref<8x128xf32, #tpu.memory_space<vmem>>, vector<8x128xf32>
      %c0_12 = arith.constant 0 : index
      %c0_13 = arith.constant 0 : index
      %13 = vector.load %arg5[%c0_12, %c0_13] : memref<8x128xf32, #tpu.memory_space<vmem>>, vector<8x128xf32>
      tpu.vector_store %arg5[%c0_12, %c0_13], %12 {strides = array<i32>} : memref<8x128xf32, #tpu.memory_space<vmem>>, vector<8x128xf32>,
      %c0_14 = arith.constant 0 : index
      %c0_15 = arith.constant 0 : index
      %14 = vector.load %arg3[%c0_14, %c0_15] : memref<1x128xf32, #tpu.memory_space<vmem>>, vector<1x128xf32>
      %15 = vector.broadcast %14 : vector<1x128xf32> to vector<8x128xf32>
      %16 = arith.mulf %12, %15 : vector<8x128xf32>
      %cst_16 = arith.constant dense<0.000000e+00> : vector<8xf32>
      %17 = vector.multi_reduction <add>, %16, %cst_16 [1] : vector<8x128xf32> to vector<8xf32>
      %18 = vector.shape_cast %17 : vector<8xf32> to vector<8x1xf32>
      %c0_17 = arith.constant 0 : index
      %19 = memref.load %arg4[%c0_17] : memref<1xf32, #tpu.memory_space<smem>>
      %20 = vector.broadcast %19 : f32 to vector<8x1xf32>
      %21 = arith.addf %18, %20 : vector<8x1xf32>
      %22 = arith.negf %21 : vector<8x1xf32>
      %23 = math.exp %22 : vector<8x1xf32>
      %cst_18 = arith.constant 1.000000e+00 : f32
      %24 = vector.broadcast %cst_18 : f32 to vector<8x1xf32>
      %25 = arith.addf %24, %23 : vector<8x1xf32>
      %26 = arith.divf %24, %25 : vector<8x1xf32>
      %27 = vector.shape_cast %26 : vector<8x1xf32> to vector<8x1xf32>
      %28 = vector.broadcast %27 : vector<8x1xf32> to vector<8x128xf32>
      %c0_19 = arith.constant 0 : index
      %c0_20 = arith.constant 0 : index
      %29 = vector.load %arg6[%c0_19, %c0_20] : memref<8x128xf32, #tpu.memory_space<vmem>>, vector<8x128xf32>
      tpu.vector_store %arg6[%c0_19, %c0_20], %28 {strides = array<i32>} : memref<8x128xf32, #tpu.memory_space<vmem>>, vector<8x128xf32>,
    } else {
    }
    return
  }
  func.func @transform_0(%arg0: i32) -> (i32, i32) {
    %c0_i32 = arith.constant 0 : i32
    %c0_i32_0 = arith.constant 0 : i32
    return %c0_i32, %arg0 : i32, i32
  }
  func.func @transform_1(%arg0: i32) -> (i32, i32) {
    %c0_i32 = arith.constant 0 : i32
    %c0_i32_0 = arith.constant 0 : i32
    return %arg0, %c0_i32 : i32, i32
  }
  func.func @transform_2(%arg0: i32) -> (i32, i32) {
    %c0_i32 = arith.constant 0 : i32
    %c0_i32_0 = arith.constant 0 : i32
    %c0_i32_1 = arith.constant 0 : i32
    return %c0_i32, %c0_i32_0 : i32, i32
  }
  func.func @transform_3(%arg0: i32) -> i32 {
    %c0_i32 = arith.constant 0 : i32
    %c0_i32_0 = arith.constant 0 : i32
    return %c0_i32 : i32
  }
  func.func @transform_4(%arg0: i32) -> (i32, i32) {
    %c0_i32 = arith.constant 0 : i32
    %c0_i32_0 = arith.constant 0 : i32
    %c0_i32_1 = arith.constant 0 : i32
    return %c0_i32, %c0_i32_0 : i32, i32
  }
  func.func @transform_5(%arg0: i32) -> (i32, i32) {
    %c0_i32 = arith.constant 0 : i32
    %c0_i32_0 = arith.constant 0 : i32
    %c0_i32_1 = arith.constant 0 : i32
    return %c0_i32, %c0_i32_0 : i32, i32
  }
}

</mosaic_0001>

<llo_original>
// kernel: _forward.1
$region0: #{_forward.1}
  #allocation0 [shape = 'u32[]', space=smem, size = 0x4, offset = 0x4, fixed_abs, tag = 'smem constant byte address 0x4 - core index']
  #allocation1 [shape = 'u32[144,128]{1,0:T(1,128)}', space=vmem, size = 0x12000, scoped, tag = 'internal scratch']
  #allocation2 [shape = 'f32[8,128]{1,0:T(8,128)}', space=vmem, size = 0x1000, scoped, tag = 'scratch operand']
  #allocation3 [shape = 'f32[1]{0:T(128)S(6)}', space=smem, size = 0x200, scoped, tag = 'scoped memory for _forward.1']
  %s0 = inlined_call_operand.vmem [shape: f32[8,128], index: 0, kind: input, shape index: {}]
  %s1 = inlined_call_operand.vmem [shape: f32[128,128], index: 1, kind: input, shape index: {}]
  %s2 = inlined_call_operand.vmem [shape: f32[1,128], index: 2, kind: input, shape index: {}]
  %s3 = inlined_call_operand.<no memory space> [shape: f32[1], index: 3, kind: input, shape index: {}]
  %s4 = inlined_call_operand.vmem [shape: f32[8,128], index: 4, kind: output, shape index: {0}]
  %s5 = inlined_call_operand.vmem [shape: f32[8,128], index: 5, kind: output, shape index: {1}]
  %6 = xla_tuple %s4, %s5
  %s7 = sld [smem:[#allocation0]]
  $region42: #{_forward.1} parent=0
    _
  %s9 = ssub.s32 1, %s7
  %s10 = scalar_select 0, %s9, %s7
  %11 = sst [smem:[#allocation3]] %s3
  // Predicated region
  $region2: #{_forward.1} parent=0 // pred_check
    _
  $region3: #{_forward.1} parent=0 // pred_check_branch
    %13 = sbr.rel (0) target = $region5
  $region4: #{_forward.1} parent=0 // pred_region
    _
  $region5: #{_forward.1} parent=0 // pred_fallthru
    _
  // Predicated region
  $region6: #{_forward.1} parent=0 // pred_check
    _
  $region7: #{_forward.1} parent=0 // pred_check_branch
    %15 = sbr.rel (0) target = $region9
  $region8: #{_forward.1} parent=0 // pred_region
    _
  $region9: #{_forward.1} parent=0 // pred_fallthru
    _
  // Predicated region
  $region10: #{_forward.1} parent=0 // pred_check
    _
  $region11: #{_forward.1} parent=0 // pred_check_branch
    %17 = sbr.rel (0) target = $region13
  $region12: #{_forward.1} parent=0 // pred_region
    _
  $region13: #{_forward.1} parent=0 // pred_fallthru
    _
  // Predicated region
  $region14: #{_forward.1} parent=0 // pred_check
    _
  $region15: #{_forward.1} parent=0 // pred_check_branch
    %19 = sbr.rel (0) target = $region17
  $region16: #{_forward.1} parent=0 // pred_region
    _
  $region17: #{_forward.1} parent=0 // pred_fallthru
    _
  %p20 = scmp.eq.s32.totalorder 0, 0
  // Predicated region
  $region18: #{_forward.1} parent=0 // pred_check
    %p21 = pneg %p20
  $region19: #{_forward.1} parent=0 // pred_check_branch
    %23 = sbr.rel (%p21) target = $region21
  $region20: #{_forward.1} parent=0 // pred_region
    %24 = vst [vmem:[#allocation2] sm:$0xff] 0.0
  $region21: #{_forward.1} parent=0 // pred_fallthru
    _
  %v25 = vld [vmem:[#allocation2] sm:$0xff]
  %v26 = vld [vmem:[%s0] sm:$0xff]
  %v27 = vld [vmem:[%s1] sm:$0xff]
  %v28 = vld [vmem:[%s1 + $0x8] sm:$0xff]
  %v29 = vld [vmem:[%s1 + $0x10] sm:$0xff]
  %v30 = vld [vmem:[%s1 + $0x18] sm:$0xff]
  %v31 = vld [vmem:[%s1 + $0x20] sm:$0xff]
  %v32 = vld [vmem:[%s1 + $0x28] sm:$0xff]
  %v33 = vld [vmem:[%s1 + $0x30] sm:$0xff]
  %v34 = vld [vmem:[%s1 + $0x38] sm:$0xff]
  %v35 = vld [vmem:[%s1 + $0x40] sm:$0xff]
  %v36 = vld [vmem:[%s1 + $0x48] sm:$0xff]
  %v37 = vld [vmem:[%s1 + $0x50] sm:$0xff]
  %v38 = vld [vmem:[%s1 + $0x58] sm:$0xff]
  %v39 = vld [vmem:[%s1 + $0x60] sm:$0xff]
  %v40 = vld [vmem:[%s1 + $0x68] sm:$0xff]
  %v41 = vld [vmem:[%s1 + $0x70] sm:$0xff]
  %v42 = vld [vmem:[%s1 + $0x78] sm:$0xff]
  %43 = vmatprep.subr.mxu0 0.0
  %44 = vmatpush1.msra.mxu0 %v27
  %45 = vmatprep.subr.mxu0 0.0
  %46 = vmatpush1.msra.mxu0 %v28
  %47 = vmatprep.subr.mxu0 0.0
  %48 = vmatpush1.msra.mxu0 %v29
  %49 = vmatprep.subr.mxu0 0.0
  %50 = vmatpush1.msra.mxu0 %v30
  %51 = vmatprep.subr.mxu0 0.0
  %52 = vmatpush1.msra.mxu0 %v31
  %53 = vmatprep.subr.mxu0 0.0
  %54 = vmatpush1.msra.mxu0 %v32
  %55 = vmatprep.subr.mxu0 0.0
  %56 = vmatpush1.msra.mxu0 %v33
  %57 = vmatprep.subr.mxu0 0.0
  %58 = vmatpush1.msra.mxu0 %v34
  %59 = vmatprep.subr.mxu0 0.0
  %60 = vmatpush1.msra.mxu0 %v35
  %61 = vmatprep.subr.mxu0 0.0
  %62 = vmatpush1.msra.mxu0 %v36
  %63 = vmatprep.subr.mxu0 0.0
  %64 = vmatpush1.msra.mxu0 %v37
  %65 = vmatprep.subr.mxu0 0.0
  %66 = vmatpush1.msra.mxu0 %v38
  %67 = vmatprep.subr.mxu0 0.0
  %68 = vmatpush1.msra.mxu0 %v39
  %69 = vmatprep.subr.mxu0 0.0
  %70 = vmatpush1.msra.mxu0 %v40
  %71 = vmatprep.subr.mxu0 0.0
  %72 = vmatpush1.msra.mxu0 %v41
  %73 = vmatprep.subr.mxu0 0.0
  %74 = vmatpush1.msra.mxu0 %v42
  %75 = vmatprep.subr.mxu0 0.0
  %76 = vmatpush1.msra.mxu0 0.0
  %77 = vmatprep.subr.mxu0 0.0
  %78 = vmatpush1.msra.mxu0 0.0
  %79 = vmatprep.subr.mxu0 0.0
  %80 = vmatpush1.msra.mxu0 0.0
  %81 = vmatprep.subr.mxu0 0.0
  %82 = vmatpush1.msra.mxu0 0.0
  %83 = vmatprep.subr.mxu0 0.0
  %84 = vmatpush1.msra.mxu0 0.0
  %85 = vmatprep.subr.mxu0 0.0
  %86 = vmatpush1.msra.mxu0 0.0
  %87 = vmatprep.subr.mxu0 0.0
  %88 = vmatpush1.msra.mxu0 0.0
  %89 = vmatprep.subr.mxu0 0.0
  %90 = vmatpush1.msra.mxu0 0.0
  %91 = vmatprep.subr.mxu0 0.0
  %92 = vmatpush1.msra.mxu0 0.0
  %93 = vmatprep.subr.mxu0 0.0
  %94 = vmatpush1.msra.mxu0 0.0
  %95 = vmatprep.subr.mxu0 0.0
  %96 = vmatpush1.msra.mxu0 0.0
  %97 = vmatprep.subr.mxu0 0.0
  %98 = vmatpush1.msra.mxu0 0.0
  %99 = vmatprep.subr.mxu0 0.0
  %100 = vmatpush1.msra.mxu0 0.0
  %101 = vmatprep.subr.mxu0 0.0
  %102 = vmatpush1.msra.mxu0 0.0
  %103 = vmatprep.subr.mxu0 0.0
  %104 = vmatpush1.msra.mxu0 0.0
  %105 = vmatprep.subr.mxu0 0.0
  %106 = vmatpush1.msra.mxu0 0.0
  %107 = vmatprep.mubr.f32.mxu0 0.0
  %108 = vmatmul.mubr.f32.gmra.mrb[0].mxu0 %v26
  %v109 = vpop.f32.mrb[0].mxu0
  %v110 = vadd.f32 0.0, %v109
  %v111 = vpop.f32.mrb[0].mxu0
  %112 = vdwg.mxu0
  %v113 = vadd.f32 %v25, %v110
  %114 = vst [vmem:[#allocation2] sm:$0xff] %v113
  // Predicated region
  $region22: #{_forward.1} parent=0 // pred_check
    %p115 = pneg %p20
  $region23: #{_forward.1} parent=0 // pred_check_branch
    %117 = sbr.rel (%p115) target = $region25
  $region24: #{_forward.1} parent=0 // pred_region
    %v118 = vld [vmem:[#allocation2] sm:$0xff]
    %119 = vst [vmem:[%s4] sm:$0xff] %v118
    %v120 = vld [vmem:[%s2] sm:$0x1]
    %v122 = vlaneseq
    %v123 = vshrl.u32 %v122, 7
    %v124 = vsub.s32 0, %v123
    %v125 = vrot.slane %v120, %v124
    %v127 = vmul.f32 %v118, %v125
    %128 = vadd.xlane.f32.xlu0 %v127
    %v129 = vpop.xlane.xlu0 %128
    %s130 = sld [smem:[#allocation3]]
    %v131 = vstv %s130
    %v132 = vadd.f32 %v129, %v131
    %v133 = vxor.u32 %v132, 2147483648
    %v134 = vmul.f32 %v133, 1.442695
    %v135 = vpow.pop %v134
    %v136 = vadd.f32 %v135, 1.0
    %v137 = vrcp.pop %v136
    %v138 = vmul.f32 1.0, %v137
    %139 = vst [vmem:[%s5] sm:$0xff] %v138
  $region25: #{_forward.1} parent=0 // pred_fallthru
    _
  // Predicated region
  $region26: #{_forward.1} parent=0 // pred_check
    _
  $region27: #{_forward.1} parent=0 // pred_check_branch
    %141 = sbr.rel (0) target = $region29
  $region28: #{_forward.1} parent=0 // pred_region
    _
  $region29: #{_forward.1} parent=0 // pred_fallthru
    _
  // Predicated region
  $region30: #{_forward.1} parent=0 // pred_check
    _
  $region31: #{_forward.1} parent=0 // pred_check_branch
    %143 = sbr.rel (0) target = $region33
  $region32: #{_forward.1} parent=0 // pred_region
    _
  $region33: #{_forward.1} parent=0 // pred_fallthru
    _
  // Predicated region
  $region34: #{_forward.1} parent=0 // pred_check
    _
  $region35: #{_forward.1} parent=0 // pred_check_branch
    %145 = sbr.rel (0) target = $region37
  $region36: #{_forward.1} parent=0 // pred_region
    _
  $region37: #{_forward.1} parent=0 // pred_fallthru
    _
  // Predicated region
  $region38: #{_forward.1} parent=0 // pred_check
    _
  $region39: #{_forward.1} parent=0 // pred_check_branch
    %147 = sbr.rel (0) target = $region41
  $region40: #{_forward.1} parent=0 // pred_region
    _
  $region41: #{_forward.1} parent=0 // pred_fallthru
    _

</llo_original>
